<compile_context>
chip_gen: v6e
topology: v6e:2x2x1
jax: 0.10.0
libtpu: 0.0.40
codegen_flags: <defaults>
</compile_context>

<pallas_src>
import jax
import jax.numpy as jnp
from jax.experimental import pallas as pl
from jax.experimental.pallas import tpu as pltpu


def mlp_kernel(x_ref,
               w1_ref, b1_ref,
               w2_ref, b2_ref,
               w3_ref, b3_ref,
               w4_ref, b4_ref,
               w5_ref, b5_ref,
               w6_ref, b6_ref,
               out_ref):
    def linear(h, w_ref, b_ref):
        # MXU matmul: operands in the weights' dtype (bf16 by default, cast on
        # VMEM-resident data), f32 accumulation; bias is a (1, N) f32 block ->
        # direct VPU broadcast.
        y = jnp.dot(h.astype(w_ref.dtype), w_ref[...],
                    preferred_element_type=jnp.float32)
        return y + b_ref[...]

    h = x_ref[...]                                         # f32 tile from HBM
    h = jnp.maximum(linear(h, w1_ref, b1_ref), 0.0)
    h = jnp.maximum(linear(h, w2_ref, b2_ref), 0.0)
    h = jnp.maximum(linear(h, w3_ref, b3_ref), 0.0)
    h = jnp.maximum(linear(h, w4_ref, b4_ref), 0.0)
    h = jnp.maximum(linear(h, w5_ref, b5_ref), 0.0)
    h = linear(h, w6_ref, b6_ref)                          # final layer: no ReLU
    out_ref[...] = h.astype(out_ref.dtype)                 # dense (B, n_out) f32


def _round_up(n, m):
    return ((n + m - 1) // m) * m


def _pick_batch_tile(batch, max_tile):
    """Balanced batch tiles; >=2 grid steps when possible (v7x dual-TC)."""
    num_tiles = max(1, -(-batch // max_tile))
    if batch > 8:
        num_tiles = max(num_tiles, 2)
    return _round_up(-(-batch // num_tiles), 8)


def net_forward(x, params, *, use_bf16_matmul=True, max_batch_tile=8192):
    """params: list of (W [in, out], b [out]) tuples, length 6."""
    B, F = x.shape
    n_out = params[-1][1].shape[0]
    compute_dtype = jnp.bfloat16 if use_bf16_matmul else jnp.float32

    # Weights cast once (tiny, ~38 KB); biases stay f32 as (1, N) blocks.
    ws = [w.astype(compute_dtype) for w, _ in params]
    bs = [b.astype(jnp.float32).reshape(1, -1) for _, b in params]

    tb = _pick_batch_tile(B, max_batch_tile)
    grid = (pl.cdiv(B, tb),)

    in_specs = [pl.BlockSpec((tb, F), lambda i: (i, 0))]
    flat = [x]
    for w, b in zip(ws, bs):
        flat.extend([w, b])
        # Constant block index -> weights/biases stay VMEM-resident across
        # every batch-grid step (fetched once).
        in_specs.append(pl.BlockSpec(w.shape, lambda i: (0, 0)))
        in_specs.append(pl.BlockSpec(b.shape, lambda i: (0, 0)))

    flops = 2 * B * sum(int(w.shape[0]) * int(w.shape[1]) for w, _ in params)
    param_bytes = (sum(int(w.size) * w.dtype.itemsize for w in ws)
                   + sum(int(b.size) * 4 for b in bs))
    bytes_accessed = int(x.size) * x.dtype.itemsize + B * n_out * 4 + param_bytes

    out = pl.pallas_call(
        mlp_kernel,
        out_shape=jax.ShapeDtypeStruct((B, n_out), jnp.float32),
        grid_spec=pl.GridSpec(
            grid=grid,
            in_specs=in_specs,
            out_specs=pl.BlockSpec((tb, n_out), lambda i: (i, 0)),
        ),
        compiler_params=pltpu.CompilerParams(
            dimension_semantics=("parallel",),   # batch axis shards across v7x's 2 TCs
        ),
        cost_estimate=pl.CostEstimate(flops=flops, transcendentals=0,
                                      bytes_accessed=bytes_accessed),
    )(*flat)

    return out


def init_params(key, dims):
    """Deterministic init mirroring nn.Linear shapes: W[in, out], b[out]."""
    params = []
    for i in range(len(dims) - 1):
        fan_in, fan_out = dims[i], dims[i + 1]
        key, kw, kb = jax.random.split(key, 3)
        bound = 1.0 / jnp.sqrt(fan_in)
        w = jax.random.uniform(kw, (fan_in, fan_out), jnp.float32, -bound, bound)
        b = jax.random.uniform(kb, (fan_out,), jnp.float32, -bound, bound)
        params.append((w, b))
    return params


def reference_forward(x, params, *, use_bf16_matmul=True):
    """Pure-JAX reference mirroring the kernel's operand dtypes."""
    cdt = jnp.bfloat16 if use_bf16_matmul else jnp.float32
    h = x.astype(jnp.float32)
    for i, (w, b) in enumerate(params):
        h = jnp.dot(h.astype(cdt), w.astype(cdt),
                    preferred_element_type=jnp.float32) + b
        if i < len(params) - 1:
            h = jnp.maximum(h, 0.0)
    return h


if __name__ == "__main__":
    # Net(n_feature, n_hidden1..5, n_output)
    n_feature, n_h1, n_h2, n_h3, n_h4, n_h5, n_output = 32, 64, 64, 32, 32, 16, 4
    batch = 8

    key = jax.random.PRNGKey(0)
    key, kx = jax.random.split(key)
    x = jax.random.normal(kx, (batch, n_feature), jnp.float32)

    params = init_params(key, [n_feature, n_h1, n_h2, n_h3, n_h4, n_h5, n_output])

    out = net_forward(x, params)
    jax.block_until_ready(out)

    ref = reference_forward(x, params)
    assert out.shape == (batch, n_output)
    assert jnp.allclose(out, ref, atol=1e-3, rtol=1e-3), "mismatch vs JAX reference"

    print("KERNEL_OK")
</pallas_src>

<mosaic_0001>
module attributes {stable_mosaic.version = 11 : i64} {
  func.func @mlp_kernel(%arg0: i32, %arg1: memref<8x32xf32, #tpu.memory_space<vmem>>, %arg2: memref<32x64xbf16, #tpu.memory_space<vmem>>, %arg3: memref<1x64xf32, #tpu.memory_space<vmem>>, %arg4: memref<64x64xbf16, #tpu.memory_space<vmem>>, %arg5: memref<1x64xf32, #tpu.memory_space<vmem>>, %arg6: memref<64x32xbf16, #tpu.memory_space<vmem>>, %arg7: memref<1x32xf32, #tpu.memory_space<vmem>>, %arg8: memref<32x32xbf16, #tpu.memory_space<vmem>>, %arg9: memref<1x32xf32, #tpu.memory_space<vmem>>, %arg10: memref<32x16xbf16, #tpu.memory_space<vmem>>, %arg11: memref<1x16xf32, #tpu.memory_space<vmem>>, %arg12: memref<16x4xbf16, #tpu.memory_space<vmem>>, %arg13: memref<1x4xf32, #tpu.memory_space<vmem>>, %arg14: memref<8x4xf32, #tpu.memory_space<vmem>>) attributes {dimension_semantics = [#tpu.dimension_semantics<parallel>], iteration_bounds = array<i64: 1>, scalar_prefetch = 0 : i64, scratch_operands = 0 : i64, tpu.core_type = #tpu.core_type<tc>, window_params = [{transform_indices = @transform_0, window_bounds = array<i64: 8, 32>}, {pipeline_mode = #tpu.pipeline_mode<synchronous>, transform_indices = @transform_1, window_bounds = array<i64: 32, 64>}, {pipeline_mode = #tpu.pipeline_mode<synchronous>, transform_indices = @transform_2, window_bounds = array<i64: 1, 64>}, {pipeline_mode = #tpu.pipeline_mode<synchronous>, transform_indices = @transform_3, window_bounds = array<i64: 64, 64>}, {pipeline_mode = #tpu.pipeline_mode<synchronous>, transform_indices = @transform_4, window_bounds = array<i64: 1, 64>}, {pipeline_mode = #tpu.pipeline_mode<synchronous>, transform_indices = @transform_5, window_bounds = array<i64: 64, 32>}, {pipeline_mode = #tpu.pipeline_mode<synchronous>, transform_indices = @transform_6, window_bounds = array<i64: 1, 32>}, {pipeline_mode = #tpu.pipeline_mode<synchronous>, transform_indices = @transform_7, window_bounds = array<i64: 32, 32>}, {pipeline_mode = #tpu.pipeline_mode<synchronous>, transform_indices = @transform_8, window_bounds = array<i64: 1, 32>}, {pipeline_mode = #tpu.pipeline_mode<synchronous>, transform_indices = @transform_9, window_bounds = array<i64: 32, 16>}, {pipeline_mode = #tpu.pipeline_mode<synchronous>, transform_indices = @transform_10, window_bounds = array<i64: 1, 16>}, {pipeline_mode = #tpu.pipeline_mode<synchronous>, transform_indices = @transform_11, window_bounds = array<i64: 16, 4>}, {pipeline_mode = #tpu.pipeline_mode<synchronous>, transform_indices = @transform_12, window_bounds = array<i64: 1, 4>}, {transform_indices = @transform_13, window_bounds = array<i64: 8, 4>}]} {
    %c0 = arith.constant 0 : index
    %c0_0 = arith.constant 0 : index
    %0 = vector.load %arg1[%c0, %c0_0] : memref<8x32xf32, #tpu.memory_space<vmem>>, vector<8x32xf32>
    %1 = arith.truncf %0 : vector<8x32xf32> to vector<8x32xbf16>
    %c0_1 = arith.constant 0 : index
    %c0_2 = arith.constant 0 : index
    %2 = vector.load %arg2[%c0_1, %c0_2] : memref<32x64xbf16, #tpu.memory_space<vmem>>, vector<32x64xbf16>
    %cst = arith.constant dense<0.000000e+00> : vector<8x64xf32>
    %3 = tpu.matmul %1, %2, %cst {dimension_numbers = #tpu.dot_dimension_numbers<[1], [0], [0], [1], [0, 0, 1, 1], [], []>} : vector<8x32xbf16>, vector<32x64xbf16>, vector<8x64xf32> -> vector<8x64xf32>
    %c0_3 = arith.constant 0 : index
    %c0_4 = arith.constant 0 : index
    %4 = vector.load %arg3[%c0_3, %c0_4] : memref<1x64xf32, #tpu.memory_space<vmem>>, vector<1x64xf32>
    %5 = vector.broadcast %4 : vector<1x64xf32> to vector<8x64xf32>
    %6 = arith.addf %3, %5 : vector<8x64xf32>
    %cst_5 = arith.constant 0.000000e+00 : f32
    %7 = vector.broadcast %cst_5 : f32 to vector<8x64xf32>
    %8 = arith.maximumf %6, %7 : vector<8x64xf32>
    %9 = arith.truncf %8 : vector<8x64xf32> to vector<8x64xbf16>
    %c0_6 = arith.constant 0 : index
    %c0_7 = arith.constant 0 : index
    %10 = vector.load %arg4[%c0_6, %c0_7] : memref<64x64xbf16, #tpu.memory_space<vmem>>, vector<64x64xbf16>
    %cst_8 = arith.constant dense<0.000000e+00> : vector<8x64xf32>
    %11 = tpu.matmul %9, %10, %cst_8 {dimension_numbers = #tpu.dot_dimension_numbers<[1], [0], [0], [1], [0, 0, 1, 1], [], []>} : vector<8x64xbf16>, vector<64x64xbf16>, vector<8x64xf32> -> vector<8x64xf32>
    %c0_9 = arith.constant 0 : index
    %c0_10 = arith.constant 0 : index
    %12 = vector.load %arg5[%c0_9, %c0_10] : memref<1x64xf32, #tpu.memory_space<vmem>>, vector<1x64xf32>
    %13 = vector.broadcast %12 : vector<1x64xf32> to vector<8x64xf32>
    %14 = arith.addf %11, %13 : vector<8x64xf32>
    %cst_11 = arith.constant 0.000000e+00 : f32
    %15 = vector.broadcast %cst_11 : f32 to vector<8x64xf32>
    %16 = arith.maximumf %14, %15 : vector<8x64xf32>
    %17 = arith.truncf %16 : vector<8x64xf32> to vector<8x64xbf16>
    %c0_12 = arith.constant 0 : index
    %c0_13 = arith.constant 0 : index
    %18 = vector.load %arg6[%c0_12, %c0_13] : memref<64x32xbf16, #tpu.memory_space<vmem>>, vector<64x32xbf16>
    %cst_14 = arith.constant dense<0.000000e+00> : vector<8x32xf32>
    %19 = tpu.matmul %17, %18, %cst_14 {dimension_numbers = #tpu.dot_dimension_numbers<[1], [0], [0], [1], [0, 0, 1, 1], [], []>} : vector<8x64xbf16>, vector<64x32xbf16>, vector<8x32xf32> -> vector<8x32xf32>
    %c0_15 = arith.constant 0 : index
    %c0_16 = arith.constant 0 : index
    %20 = vector.load %arg7[%c0_15, %c0_16] : memref<1x32xf32, #tpu.memory_space<vmem>>, vector<1x32xf32>
    %21 = vector.broadcast %20 : vector<1x32xf32> to vector<8x32xf32>
    %22 = arith.addf %19, %21 : vector<8x32xf32>
    %cst_17 = arith.constant 0.000000e+00 : f32
    %23 = vector.broadcast %cst_17 : f32 to vector<8x32xf32>
    %24 = arith.maximumf %22, %23 : vector<8x32xf32>
    %25 = arith.truncf %24 : vector<8x32xf32> to vector<8x32xbf16>
    %c0_18 = arith.constant 0 : index
    %c0_19 = arith.constant 0 : index
    %26 = vector.load %arg8[%c0_18, %c0_19] : memref<32x32xbf16, #tpu.memory_space<vmem>>, vector<32x32xbf16>
    %cst_20 = arith.constant dense<0.000000e+00> : vector<8x32xf32>
    %27 = tpu.matmul %25, %26, %cst_20 {dimension_numbers = #tpu.dot_dimension_numbers<[1], [0], [0], [1], [0, 0, 1, 1], [], []>} : vector<8x32xbf16>, vector<32x32xbf16>, vector<8x32xf32> -> vector<8x32xf32>
    %c0_21 = arith.constant 0 : index
    %c0_22 = arith.constant 0 : index
    %28 = vector.load %arg9[%c0_21, %c0_22] : memref<1x32xf32, #tpu.memory_space<vmem>>, vector<1x32xf32>
    %29 = vector.broadcast %28 : vector<1x32xf32> to vector<8x32xf32>
    %30 = arith.addf %27, %29 : vector<8x32xf32>
    %cst_23 = arith.constant 0.000000e+00 : f32
    %31 = vector.broadcast %cst_23 : f32 to vector<8x32xf32>
    %32 = arith.maximumf %30, %31 : vector<8x32xf32>
    %33 = arith.truncf %32 : vector<8x32xf32> to vector<8x32xbf16>
    %c0_24 = arith.constant 0 : index
    %c0_25 = arith.constant 0 : index
    %34 = vector.load %arg10[%c0_24, %c0_25] : memref<32x16xbf16, #tpu.memory_space<vmem>>, vector<32x16xbf16>
    %cst_26 = arith.constant dense<0.000000e+00> : vector<8x16xf32>
    %35 = tpu.matmul %33, %34, %cst_26 {dimension_numbers = #tpu.dot_dimension_numbers<[1], [0], [0], [1], [0, 0, 1, 1], [], []>} : vector<8x32xbf16>, vector<32x16xbf16>, vector<8x16xf32> -> vector<8x16xf32>
    %c0_27 = arith.constant 0 : index
    %c0_28 = arith.constant 0 : index
    %36 = vector.load %arg11[%c0_27, %c0_28] : memref<1x16xf32, #tpu.memory_space<vmem>>, vector<1x16xf32>
    %37 = vector.broadcast %36 : vector<1x16xf32> to vector<8x16xf32>
    %38 = arith.addf %35, %37 : vector<8x16xf32>
    %cst_29 = arith.constant 0.000000e+00 : f32
    %39 = vector.broadcast %cst_29 : f32 to vector<8x16xf32>
    %40 = arith.maximumf %38, %39 : vector<8x16xf32>
    %41 = arith.truncf %40 : vector<8x16xf32> to vector<8x16xbf16>
    %c0_30 = arith.constant 0 : index
    %c0_31 = arith.constant 0 : index
    %42 = vector.load %arg12[%c0_30, %c0_31] : memref<16x4xbf16, #tpu.memory_space<vmem>>, vector<16x4xbf16>
    %cst_32 = arith.constant dense<0.000000e+00> : vector<8x4xf32>
    %43 = tpu.matmul %41, %42, %cst_32 {dimension_numbers = #tpu.dot_dimension_numbers<[1], [0], [0], [1], [0, 0, 1, 1], [], []>} : vector<8x16xbf16>, vector<16x4xbf16>, vector<8x4xf32> -> vector<8x4xf32>
    %c0_33 = arith.constant 0 : index
    %c0_34 = arith.constant 0 : index
    %44 = vector.load %arg13[%c0_33, %c0_34] : memref<1x4xf32, #tpu.memory_space<vmem>>, vector<1x4xf32>
    %45 = vector.broadcast %44 : vector<1x4xf32> to vector<8x4xf32>
    %46 = arith.addf %43, %45 : vector<8x4xf32>
    %c0_35 = arith.constant 0 : index
    %c0_36 = arith.constant 0 : index
    %47 = vector.load %arg14[%c0_35, %c0_36] : memref<8x4xf32, #tpu.memory_space<vmem>>, vector<8x4xf32>
    tpu.vector_store %arg14[%c0_35, %c0_36], %46 {strides = array<i32>} : memref<8x4xf32, #tpu.memory_space<vmem>>, vector<8x4xf32>,
    return
  }
  func.func @transform_0(%arg0: i32) -> (i32, i32) {
    %c0_i32 = arith.constant 0 : i32
    %c0_i32_0 = arith.constant 0 : i32
    return %arg0, %c0_i32 : i32, i32
  }
  func.func @transform_1(%arg0: i32) -> (i32, i32) {
    %c0_i32 = arith.constant 0 : i32
    %c0_i32_0 = arith.constant 0 : i32
    %c0_i32_1 = arith.constant 0 : i32
    return %c0_i32, %c0_i32_0 : i32, i32
  }
  func.func @transform_2(%arg0: i32) -> (i32, i32) {
    %c0_i32 = arith.constant 0 : i32
    %c0_i32_0 = arith.constant 0 : i32
    %c0_i32_1 = arith.constant 0 : i32
    return %c0_i32, %c0_i32_0 : i32, i32
  }
  func.func @transform_3(%arg0: i32) -> (i32, i32) {
    %c0_i32 = arith.constant 0 : i32
    %c0_i32_0 = arith.constant 0 : i32
    %c0_i32_1 = arith.constant 0 : i32
    return %c0_i32, %c0_i32_0 : i32, i32
  }
  func.func @transform_4(%arg0: i32) -> (i32, i32) {
    %c0_i32 = arith.constant 0 : i32
    %c0_i32_0 = arith.constant 0 : i32
    %c0_i32_1 = arith.constant 0 : i32
    return %c0_i32, %c0_i32_0 : i32, i32
  }
  func.func @transform_5(%arg0: i32) -> (i32, i32) {
    %c0_i32 = arith.constant 0 : i32
    %c0_i32_0 = arith.constant 0 : i32
    %c0_i32_1 = arith.constant 0 : i32
    return %c0_i32, %c0_i32_0 : i32, i32
  }
  func.func @transform_6(%arg0: i32) -> (i32, i32) {
    %c0_i32 = arith.constant 0 : i32
    %c0_i32_0 = arith.constant 0 : i32
    %c0_i32_1 = arith.constant 0 : i32
    return %c0_i32, %c0_i32_0 : i32, i32
  }
  func.func @transform_7(%arg0: i32) -> (i32, i32) {
    %c0_i32 = arith.constant 0 : i32
    %c0_i32_0 = arith.constant 0 : i32
    %c0_i32_1 = arith.constant 0 : i32
    return %c0_i32, %c0_i32_0 : i32, i32
  }
  func.func @transform_8(%arg0: i32) -> (i32, i32) {
    %c0_i32 = arith.constant 0 : i32
    %c0_i32_0 = arith.constant 0 : i32
    %c0_i32_1 = arith.constant 0 : i32
    return %c0_i32, %c0_i32_0 : i32, i32
  }
  func.func @transform_9(%arg0: i32) -> (i32, i32) {
    %c0_i32 = arith.constant 0 : i32
    %c0_i32_0 = arith.constant 0 : i32
    %c0_i32_1 = arith.constant 0 : i32
    return %c0_i32, %c0_i32_0 : i32, i32
  }
  func.func @transform_10(%arg0: i32) -> (i32, i32) {
    %c0_i32 = arith.constant 0 : i32
    %c0_i32_0 = arith.constant 0 : i32
    %c0_i32_1 = arith.constant 0 : i32
    return %c0_i32, %c0_i32_0 : i32, i32
  }
  func.func @transform_11(%arg0: i32) -> (i32, i32) {
    %c0_i32 = arith.constant 0 : i32
    %c0_i32_0 = arith.constant 0 : i32
    %c0_i32_1 = arith.constant 0 : i32
    return %c0_i32, %c0_i32_0 : i32, i32
  }
  func.func @transform_12(%arg0: i32) -> (i32, i32) {
    %c0_i32 = arith.constant 0 : i32
    %c0_i32_0 = arith.constant 0 : i32
    %c0_i32_1 = arith.constant 0 : i32
    return %c0_i32, %c0_i32_0 : i32, i32
  }
  func.func @transform_13(%arg0: i32) -> (i32, i32) {
    %c0_i32 = arith.constant 0 : i32
    %c0_i32_0 = arith.constant 0 : i32
    return %arg0, %c0_i32 : i32, i32
  }
}

</mosaic_0001>

<llo_original>
// kernel: tpu_custom_call.1
$region0: #{tpu_custom_call.1}
  #allocation0 [shape = 'u32[]', space=smem, size = 0x4, offset = 0x4, fixed_abs, tag = 'smem constant byte address 0x4 - core index']
  #allocation1 [shape = 'u32[144,128]{1,0:T(1,128)}', space=vmem, size = 0x12000, scoped, tag = 'internal scratch']
  %s0 = inlined_call_operand.hbm [shape: f32[8,32], index: 0, kind: input, shape index: {}]
  %s1 = inlined_call_operand.vmem [shape: bf16[32,64], index: 1, kind: input, shape index: {}]
  %s2 = inlined_call_operand.vmem [shape: f32[1,64], index: 2, kind: input, shape index: {}]
  %s3 = inlined_call_operand.vmem [shape: bf16[64,64], index: 3, kind: input, shape index: {}]
  %s4 = inlined_call_operand.hbm [shape: f32[1,64], index: 4, kind: input, shape index: {}]
  %s5 = inlined_call_operand.vmem [shape: bf16[64,32], index: 5, kind: input, shape index: {}]
  %s6 = inlined_call_operand.vmem [shape: f32[1,32], index: 6, kind: input, shape index: {}]
  %s7 = inlined_call_operand.vmem [shape: bf16[32,32], index: 7, kind: input, shape index: {}]
  %s8 = inlined_call_operand.vmem [shape: f32[1,32], index: 8, kind: input, shape index: {}]
  %s9 = inlined_call_operand.vmem [shape: bf16[32,16], index: 9, kind: input, shape index: {}]
  %s10 = inlined_call_operand.vmem [shape: f32[1,16], index: 10, kind: input, shape index: {}]
  %s11 = inlined_call_operand.vmem [shape: bf16[16,4], index: 11, kind: input, shape index: {}]
  %s12 = inlined_call_operand.vmem [shape: f32[1,4], index: 12, kind: input, shape index: {}]
  %s13 = inlined_call_operand.vmem [shape: f32[8,4], index: 13, kind: output, shape index: {}]
  %s14 = sld [smem:[#allocation0]]
  $region70: #{tpu_custom_call.1} parent=0
    _
  %s16 = ssub.s32 1, %s14
  %s17 = scalar_select 0, %s16, %s14
  $region1: #{tpu_custom_call.1} parent=0
    #allocation2 [shape = 'u8[4096]{0}', space=vmem, size = 0x1000, scoped, tag = 'input window, operand 0, single buffered']
    #allocation3 [shape = 's32[1]{0}', space=sflag, size = 0x4, scoped, tag = 'scoped memory for tpu_custom_call.1']
    #allocation4 [shape = 'u8[512]{0}', space=vmem, size = 0x400, scoped, tag = 'input window, operand 4, single buffered']
    #allocation5 [shape = 's32[1]{0}', space=sflag, size = 0x4, scoped, tag = 'scoped memory for tpu_custom_call.1']
    %18 = vsyncpa [#allocation3], 0
    %19 = vsyncpa [#allocation5], 0
    // Predicated region
    $region2: #{tpu_custom_call.1} parent=1 // pred_check
      _
    $region3: #{tpu_custom_call.1} parent=1 // pred_check_branch
      %21 = sbr.rel (0) target = $region5
    $region4: #{tpu_custom_call.1} parent=1 // pred_region
      %s23 = ssub.s32 128, 128
      %24 = vsyncadd [#allocation3], %s23
      %s26 = sshll.u32 [#allocation2], 4
      %s27 = int_to_ptr.vmem [resolvable:$true] %s26
      %29 = dma.hbm_to_vmem [thread:$0]  %s0, 128, %s27, [#allocation3]
    $region5: #{tpu_custom_call.1} parent=1 // pred_fallthru
      _
    // Predicated region
    $region6: #{tpu_custom_call.1} parent=1 // pred_check
      _
    $region7: #{tpu_custom_call.1} parent=1 // pred_check_branch
      %31 = sbr.rel (0) target = $region9
    $region8: #{tpu_custom_call.1} parent=1 // pred_region
      _
    $region9: #{tpu_custom_call.1} parent=1 // pred_fallthru
      _
    // Predicated region
    $region10: #{tpu_custom_call.1} parent=1 // pred_check
      _
    $region11: #{tpu_custom_call.1} parent=1 // pred_check_branch
      %33 = sbr.rel (0) target = $region13
    $region12: #{tpu_custom_call.1} parent=1 // pred_region
      _
    $region13: #{tpu_custom_call.1} parent=1 // pred_fallthru
      _
    // Predicated region
    $region14: #{tpu_custom_call.1} parent=1 // pred_check
      _
    $region15: #{tpu_custom_call.1} parent=1 // pred_check_branch
      %35 = sbr.rel (0) target = $region17
    $region16: #{tpu_custom_call.1} parent=1 // pred_region
      _
    $region17: #{tpu_custom_call.1} parent=1 // pred_fallthru
      _
    // Predicated region
    $region18: #{tpu_custom_call.1} parent=1 // pred_check
      _
    $region19: #{tpu_custom_call.1} parent=1 // pred_check_branch
      %37 = sbr.rel (0) target = $region21
    $region20: #{tpu_custom_call.1} parent=1 // pred_region
      %s39 = ssub.s32 16, 16
      %40 = vsyncadd [#allocation5], %s39
      %s42 = sshll.u32 [#allocation4], 4
      %s43 = int_to_ptr.vmem [resolvable:$true] %s42
      %45 = dma.hbm_to_vmem [thread:$0]  %s4, 16, %s43, [#allocation5]
    $region21: #{tpu_custom_call.1} parent=1 // pred_fallthru
      _
    // Predicated region
    $region22: #{tpu_custom_call.1} parent=1 // pred_check
      _
    $region23: #{tpu_custom_call.1} parent=1 // pred_check_branch
      %47 = sbr.rel (0) target = $region25
    $region24: #{tpu_custom_call.1} parent=1 // pred_region
      _
    $region25: #{tpu_custom_call.1} parent=1 // pred_fallthru
      _
    // Predicated region
    $region26: #{tpu_custom_call.1} parent=1 // pred_check
      _
    $region27: #{tpu_custom_call.1} parent=1 // pred_check_branch
      %49 = sbr.rel (0) target = $region29
    $region28: #{tpu_custom_call.1} parent=1 // pred_region
      _
    $region29: #{tpu_custom_call.1} parent=1 // pred_fallthru
      _
    // Predicated region
    $region30: #{tpu_custom_call.1} parent=1 // pred_check
      _
    $region31: #{tpu_custom_call.1} parent=1 // pred_check_branch
      %51 = sbr.rel (0) target = $region33
    $region32: #{tpu_custom_call.1} parent=1 // pred_region
      _
    $region33: #{tpu_custom_call.1} parent=1 // pred_fallthru
      _
    // Predicated region
    $region34: #{tpu_custom_call.1} parent=1 // pred_check
      _
    $region35: #{tpu_custom_call.1} parent=1 // pred_check_branch
      %53 = sbr.rel (0) target = $region37
    $region36: #{tpu_custom_call.1} parent=1 // pred_region
      _
    $region37: #{tpu_custom_call.1} parent=1 // pred_fallthru
      _
    // Predicated region
    $region38: #{tpu_custom_call.1} parent=1 // pred_check
      _
    $region39: #{tpu_custom_call.1} parent=1 // pred_check_branch
      %55 = sbr.rel (0) target = $region41
    $region40: #{tpu_custom_call.1} parent=1 // pred_region
      _
    $region41: #{tpu_custom_call.1} parent=1 // pred_fallthru
      _
    // Predicated region
    $region42: #{tpu_custom_call.1} parent=1 // pred_check
      _
    $region43: #{tpu_custom_call.1} parent=1 // pred_check_branch
      %57 = sbr.rel (0) target = $region45
    $region44: #{tpu_custom_call.1} parent=1 // pred_region
      _
    $region45: #{tpu_custom_call.1} parent=1 // pred_fallthru
      _
    // Predicated region
    $region46: #{tpu_custom_call.1} parent=1 // pred_check
      _
    $region47: #{tpu_custom_call.1} parent=1 // pred_check_branch
      %59 = sbr.rel (0) target = $region49
    $region48: #{tpu_custom_call.1} parent=1 // pred_region
      _
    $region49: #{tpu_custom_call.1} parent=1 // pred_fallthru
      _
    // Predicated region
    $region50: #{tpu_custom_call.1} parent=1 // pred_check
      _
    $region51: #{tpu_custom_call.1} parent=1 // pred_check_branch
      %61 = sbr.rel (0) target = $region53
    $region52: #{tpu_custom_call.1} parent=1 // pred_region
      _
    $region53: #{tpu_custom_call.1} parent=1 // pred_fallthru
      _
    // Predicated region
    $region54: #{tpu_custom_call.1} parent=1 // pred_check
      _
    $region55: #{tpu_custom_call.1} parent=1 // pred_check_branch
      %63 = sbr.rel (0) target = $region57
    $region56: #{tpu_custom_call.1} parent=1 // pred_region
      %64 = dma.done [#allocation3], 128
    $region57: #{tpu_custom_call.1} parent=1 // pred_fallthru
      _
    // Predicated region
    $region58: #{tpu_custom_call.1} parent=1 // pred_check
      _
    $region59: #{tpu_custom_call.1} parent=1 // pred_check_branch
      %66 = sbr.rel (0) target = $region61
    $region60: #{tpu_custom_call.1} parent=1 // pred_region
      %67 = dma.done [#allocation5], 16
    $region61: #{tpu_custom_call.1} parent=1 // pred_fallthru
      _
    %v69 = vld [vmem:[#allocation2] sm:$0xff]
    %v70 = vpack.c.bf16 %v69, %v69
    %v71 = vld [vmem:[%s1] sm:$0xf]
    %v72 = vld [vmem:[%s1 + $0x4] sm:$0xf]
    %v73 = vld [vmem:[%s1 + $0x8] sm:$0xf]
    %v74 = vld [vmem:[%s1 + $0xc] sm:$0xf]
    %v75 = vld [vmem:[%s2] sm:$0x1]
    %v77 = vlaneseq
    %v78 = vshrl.u32 %v77, 7
    %v79 = vsub.s32 0, %v78
    %v80 = vrot.slane %v75, %v79
    %v86 = vunpack.c.l.b16 %v71
    %v87 = vunpack.c.l.b16 %v72
    %v88 = vunpack.c.l.b16 %v73
    %v89 = vunpack.c.l.b16 %v74
    %v90 = vpack.c.b16 %v87, %v86
    %v91 = vpack.c.b16 %v89, %v88
    %vm94 = vcmask 261120
    %v96 = vsel %vm94, %v70, 0
    %98 = vmatprep.subr.bf16.mxu0 0
    %99 = vmatpush1.bf16.msra.mxu0 0
    %100 = vmatprep.subr.bf16.mxu0 0
    %101 = vmatpush1.bf16.msra.mxu0 0
    %102 = vmatprep.subr.bf16.mxu0 0
    %103 = vmatpush1.bf16.msra.mxu0 0
    %104 = vmatprep.subr.bf16.mxu0 0
    %105 = vmatpush1.bf16.msra.mxu0 0
    %106 = vmatprep.subr.bf16.mxu0 0
    %107 = vmatpush1.bf16.msra.mxu0 0
    %108 = vmatprep.subr.bf16.mxu0 0
    %109 = vmatpush1.bf16.msra.mxu0 0
    %110 = vmatprep.subr.bf16.mxu0 0
    %111 = vmatpush1.bf16.msra.mxu0 %v91
    %112 = vmatprep.subr.bf16.mxu0 0
    %113 = vmatpush1.bf16.msra.mxu0 %v90
    %114 = vmatprep.subr.bf16.mxu0 0
    %115 = vmatpush2.bf16.msra.mxu0 0
    %116 = vmatprep.subr.bf16.mxu0 0
    %117 = vmatpush2.bf16.msra.mxu0 0
    %118 = vmatprep.subr.bf16.mxu0 0
    %119 = vmatpush2.bf16.msra.mxu0 0
    %120 = vmatprep.subr.bf16.mxu0 0
    %121 = vmatpush2.bf16.msra.mxu0 0
    %122 = vmatprep.subr.bf16.mxu0 0
    %123 = vmatpush2.bf16.msra.mxu0 0
    %124 = vmatprep.subr.bf16.mxu0 0
    %125 = vmatpush2.bf16.msra.mxu0 0
    %126 = vmatprep.subr.bf16.mxu0 0
    %127 = vmatpush2.bf16.msra.mxu0 0
    %128 = vmatprep.subr.bf16.mxu0 0
    %129 = vmatpush2.bf16.msra.mxu0 0
    %130 = vmatprep.mubr.bf16.mxu0 0
    %131 = vmatmul.mubr.bf16.gmra.mxu0 %v96
    %v132 = vpop.f32.mrf.mxu0
    %v133 = vadd.f32 %v80, %v132
    %v134 = vpop.f32.mrf.mxu0
    %v135 = vpop.f32.mrf.mxu0
    %v136 = vpop.f32.mrf.mxu0
    %137 = vdwg.mxu0
    %v138 = vmax.f32 %v133, 0.0
    %v139 = vpack.c.bf16 %v138, %v138
    %v140 = vld [vmem:[%s3] sm:$0xf]
    %v141 = vld [vmem:[%s3 + $0x4] sm:$0xf]
    %v142 = vld [vmem:[%s3 + $0x8] sm:$0xf]
    %v143 = vld [vmem:[%s3 + $0xc] sm:$0xf]
    %v144 = vld [vmem:[%s3 + $0x10] sm:$0xf]
    %v145 = vld [vmem:[%s3 + $0x14] sm:$0xf]
    %v146 = vld [vmem:[%s3 + $0x18] sm:$0xf]
    %v147 = vld [vmem:[%s3 + $0x1c] sm:$0xf]
    %v148 = vld [vmem:[#allocation4] sm:$0x1]
    %v150 = vlaneseq
    %v151 = vshrl.u32 %v150, 7
    %v152 = vsub.s32 0, %v151
    %v153 = vrot.slane %v148, %v152
    %v163 = vunpack.c.l.b16 %v140
    %v164 = vunpack.c.l.b16 %v141
    %v165 = vunpack.c.l.b16 %v142
    %v166 = vunpack.c.l.b16 %v143
    %v167 = vunpack.c.l.b16 %v144
    %v168 = vunpack.c.l.b16 %v145
    %v169 = vunpack.c.l.b16 %v146
    %v170 = vunpack.c.l.b16 %v147
    %v171 = vpack.c.b16 %v164, %v163
    %v172 = vpack.c.b16 %v166, %v165
    %v173 = vpack.c.b16 %v168, %v167
    %v174 = vpack.c.b16 %v170, %v169
    %vm179 = vcmask 523264
    %v181 = vsel %vm179, %v139, 0
    %183 = vmatprep.subr.bf16.mxu0 0
    %184 = vmatpush1.bf16.msra.mxu0 0
    %185 = vmatprep.subr.bf16.mxu0 0
    %186 = vmatpush1.bf16.msra.mxu0 0
    %187 = vmatprep.subr.bf16.mxu0 0
    %188 = vmatpush1.bf16.msra.mxu0 0
    %189 = vmatprep.subr.bf16.mxu0 0
    %190 = vmatpush1.bf16.msra.mxu0 0
    %191 = vmatprep.subr.bf16.mxu0 0
    %192 = vmatpush1.bf16.msra.mxu0 %v174
    %193 = vmatprep.subr.bf16.mxu0 0
    %194 = vmatpush1.bf16.msra.mxu0 %v173
    %195 = vmatprep.subr.bf16.mxu0 0
    %196 = vmatpush1.bf16.msra.mxu0 %v172
    %197 = vmatprep.subr.bf16.mxu0 0
    %198 = vmatpush1.bf16.msra.mxu0 %v171
    %199 = vmatprep.subr.bf16.mxu0 0
    %200 = vmatpush2.bf16.msra.mxu0 0
    %201 = vmatprep.subr.bf16.mxu0 0
    %202 = vmatpush2.bf16.msra.mxu0 0
    %203 = vmatprep.subr.bf16.mxu0 0
    %204 = vmatpush2.bf16.msra.mxu0 0
    %205 = vmatprep.subr.bf16.mxu0 0
    %206 = vmatpush2.bf16.msra.mxu0 0
    %207 = vmatprep.subr.bf16.mxu0 0
    %208 = vmatpush2.bf16.msra.mxu0 0
    %209 = vmatprep.subr.bf16.mxu0 0
    %210 = vmatpush2.bf16.msra.mxu0 0
    %211 = vmatprep.subr.bf16.mxu0 0
    %212 = vmatpush2.bf16.msra.mxu0 0
    %213 = vmatprep.subr.bf16.mxu0 0
    %214 = vmatpush2.bf16.msra.mxu0 0
    %215 = vmatprep.mubr.bf16.mxu0 0
    %216 = vmatmul.mubr.bf16.gmra.mxu0 %v181
    %v217 = vpop.f32.mrf.mxu0
    %v218 = vadd.f32 %v153, %v217
    %v219 = vpop.f32.mrf.mxu0
    %v220 = vpop.f32.mrf.mxu0
    %v221 = vpop.f32.mrf.mxu0
    %222 = vdwg.mxu0
    %v223 = vmax.f32 %v218, 0.0
    %v224 = vpack.c.bf16 %v223, %v223
    %v225 = vld [vmem:[%s5] sm:$0xf]
    %v226 = vld [vmem:[%s5 + $0x4] sm:$0xf]
    %v227 = vld [vmem:[%s5 + $0x8] sm:$0xf]
    %v228 = vld [vmem:[%s5 + $0xc] sm:$0xf]
    %v229 = vld [vmem:[%s5 + $0x10] sm:$0xf]
    %v230 = vld [vmem:[%s5 + $0x14] sm:$0xf]
    %v231 = vld [vmem:[%s5 + $0x18] sm:$0xf]
    %v232 = vld [vmem:[%s5 + $0x1c] sm:$0xf]
    %v233 = vld [vmem:[%s6] sm:$0x1]
    %v235 = vlaneseq
    %v236 = vshrl.u32 %v235, 7
    %v237 = vsub.s32 0, %v236
    %v238 = vrot.slane %v233, %v237
    %v248 = vunpack.c.l.b16 %v225
    %v249 = vunpack.c.l.b16 %v226
    %v250 = vunpack.c.l.b16 %v227
    %v251 = vunpack.c.l.b16 %v228
    %v252 = vunpack.c.l.b16 %v229
    %v253 = vunpack.c.l.b16 %v230
    %v254 = vunpack.c.l.b16 %v231
    %v255 = vunpack.c.l.b16 %v232
    %v256 = vpack.c.b16 %v249, %v248
    %v257 = vpack.c.b16 %v251, %v250
    %v258 = vpack.c.b16 %v253, %v252
    %v259 = vpack.c.b16 %v255, %v254
    %v265 = vsel %vm179, %v224, 0
    %267 = vmatprep.subr.bf16.mxu0 0
    %268 = vmatpush1.bf16.msra.mxu0 0
    %269 = vmatprep.subr.bf16.mxu0 0
    %270 = vmatpush1.bf16.msra.mxu0 0
    %271 = vmatprep.subr.bf16.mxu0 0
    %272 = vmatpush1.bf16.msra.mxu0 0
    %273 = vmatprep.subr.bf16.mxu0 0
    %274 = vmatpush1.bf16.msra.mxu0 0
    %275 = vmatprep.subr.bf16.mxu0 0
    %276 = vmatpush1.bf16.msra.mxu0 %v259
    %277 = vmatprep.subr.bf16.mxu0 0
    %278 = vmatpush1.bf16.msra.mxu0 %v258
    %279 = vmatprep.subr.bf16.mxu0 0
    %280 = vmatpush1.bf16.msra.mxu0 %v257
    %281 = vmatprep.subr.bf16.mxu0 0
    %282 = vmatpush1.bf16.msra.mxu0 %v256
    %283 = vmatprep.subr.bf16.mxu0 0
    %284 = vmatpush2.bf16.msra.mxu0 0
    %285 = vmatprep.subr.bf16.mxu0 0
    %286 = vmatpush2.bf16.msra.mxu0 0
    %287 = vmatprep.subr.bf16.mxu0 0
    %288 = vmatpush2.bf16.msra.mxu0 0
    %289 = vmatprep.subr.bf16.mxu0 0
    %290 = vmatpush2.bf16.msra.mxu0 0
    %291 = vmatprep.subr.bf16.mxu0 0
    %292 = vmatpush2.bf16.msra.mxu0 0
    %293 = vmatprep.subr.bf16.mxu0 0
    %294 = vmatpush2.bf16.msra.mxu0 0
    %295 = vmatprep.subr.bf16.mxu0 0
    %296 = vmatpush2.bf16.msra.mxu0 0
    %297 = vmatprep.subr.bf16.mxu0 0
    %298 = vmatpush2.bf16.msra.mxu0 0
    %299 = vmatprep.mubr.bf16.mxu0 0
    %300 = vmatmul.mubr.bf16.gmra.mxu0 %v265
    %v301 = vpop.f32.mrf.mxu0
    %v302 = vadd.f32 %v238, %v301
    %v303 = vpop.f32.mrf.mxu0
    %v304 = vpop.f32.mrf.mxu0
    %v305 = vpop.f32.mrf.mxu0
    %306 = vdwg.mxu0
    %v307 = vmax.f32 %v302, 0.0
    %v308 = vpack.c.bf16 %v307, %v307
    %v309 = vld [vmem:[%s7] sm:$0xf]
    %v310 = vld [vmem:[%s7 + $0x4] sm:$0xf]
    %v311 = vld [vmem:[%s7 + $0x8] sm:$0xf]
    %v312 = vld [vmem:[%s7 + $0xc] sm:$0xf]
    %v313 = vld [vmem:[%s8] sm:$0x1]
    %v315 = vlaneseq
    %v316 = vshrl.u32 %v315, 7
    %v317 = vsub.s32 0, %v316
    %v318 = vrot.slane %v313, %v317
    %v324 = vunpack.c.l.b16 %v309
    %v325 = vunpack.c.l.b16 %v310
    %v326 = vunpack.c.l.b16 %v311
    %v327 = vunpack.c.l.b16 %v312
    %v328 = vpack.c.b16 %v325, %v324
    %v329 = vpack.c.b16 %v327, %v326
    %v333 = vsel %vm94, %v308, 0
    %335 = vmatprep.subr.bf16.mxu0 0
    %336 = vmatpush1.bf16.msra.mxu0 0
    %337 = vmatprep.subr.bf16.mxu0 0
    %338 = vmatpush1.bf16.msra.mxu0 0
    %339 = vmatprep.subr.bf16.mxu0 0
    %340 = vmatpush1.bf16.msra.mxu0 0
    %341 = vmatprep.subr.bf16.mxu0 0
    %342 = vmatpush1.bf16.msra.mxu0 0
    %343 = vmatprep.subr.bf16.mxu0 0
    %344 = vmatpush1.bf16.msra.mxu0 0
    %345 = vmatprep.subr.bf16.mxu0 0
    %346 = vmatpush1.bf16.msra.mxu0 0
    %347 = vmatprep.subr.bf16.mxu0 0
    %348 = vmatpush1.bf16.msra.mxu0 %v329
    %349 = vmatprep.subr.bf16.mxu0 0
    %350 = vmatpush1.bf16.msra.mxu0 %v328
    %351 = vmatprep.subr.bf16.mxu0 0
    %352 = vmatpush2.bf16.msra.mxu0 0
    %353 = vmatprep.subr.bf16.mxu0 0
    %354 = vmatpush2.bf16.msra.mxu0 0
    %355 = vmatprep.subr.bf16.mxu0 0
    %356 = vmatpush2.bf16.msra.mxu0 0
    %357 = vmatprep.subr.bf16.mxu0 0
    %358 = vmatpush2.bf16.msra.mxu0 0
    %359 = vmatprep.subr.bf16.mxu0 0
    %360 = vmatpush2.bf16.msra.mxu0 0
    %361 = vmatprep.subr.bf16.mxu0 0
    %362 = vmatpush2.bf16.msra.mxu0 0
    %363 = vmatprep.subr.bf16.mxu0 0
    %364 = vmatpush2.bf16.msra.mxu0 0
    %365 = vmatprep.subr.bf16.mxu0 0
    %366 = vmatpush2.bf16.msra.mxu0 0
    %367 = vmatprep.mubr.bf16.mxu0 0
    %368 = vmatmul.mubr.bf16.gmra.mxu0 %v333
    %v369 = vpop.f32.mrf.mxu0
    %v370 = vadd.f32 %v318, %v369
    %v371 = vpop.f32.mrf.mxu0
    %v372 = vpop.f32.mrf.mxu0
    %v373 = vpop.f32.mrf.mxu0
    %374 = vdwg.mxu0
    %v375 = vmax.f32 %v370, 0.0
    %v376 = vpack.c.bf16 %v375, %v375
    %v377 = vld [vmem:[%s9] sm:$0xf]
    %v378 = vld [vmem:[%s9 + $0x4] sm:$0xf]
    %v379 = vld [vmem:[%s9 + $0x8] sm:$0xf]
    %v380 = vld [vmem:[%s9 + $0xc] sm:$0xf]
    %v381 = vld [vmem:[%s10] sm:$0x1]
    %v383 = vlaneseq
    %v384 = vshrl.u32 %v383, 7
    %v385 = vsub.s32 0, %v384
    %v386 = vrot.slane %v381, %v385
    %v392 = vunpack.c.l.b16 %v377
    %v393 = vunpack.c.l.b16 %v378
    %v394 = vunpack.c.l.b16 %v379
    %v395 = vunpack.c.l.b16 %v380
    %v396 = vpack.c.b16 %v393, %v392
    %v397 = vpack.c.b16 %v395, %v394
    %v401 = vsel %vm94, %v376, 0
    %403 = vmatprep.subr.bf16.mxu0 0
    %404 = vmatpush1.bf16.msra.mxu0 0
    %405 = vmatprep.subr.bf16.mxu0 0
    %406 = vmatpush1.bf16.msra.mxu0 0
    %407 = vmatprep.subr.bf16.mxu0 0
    %408 = vmatpush1.bf16.msra.mxu0 0
    %409 = vmatprep.subr.bf16.mxu0 0
    %410 = vmatpush1.bf16.msra.mxu0 0
    %411 = vmatprep.subr.bf16.mxu0 0
    %412 = vmatpush1.bf16.msra.mxu0 0
    %413 = vmatprep.subr.bf16.mxu0 0
    %414 = vmatpush1.bf16.msra.mxu0 0
    %415 = vmatprep.subr.bf16.mxu0 0
    %416 = vmatpush1.bf16.msra.mxu0 %v397
    %417 = vmatprep.subr.bf16.mxu0 0
    %418 = vmatpush1.bf16.msra.mxu0 %v396
    %419 = vmatprep.subr.bf16.mxu0 0
    %420 = vmatpush2.bf16.msra.mxu0 0
    %421 = vmatprep.subr.bf16.mxu0 0
    %422 = vmatpush2.bf16.msra.mxu0 0
    %423 = vmatprep.subr.bf16.mxu0 0
    %424 = vmatpush2.bf16.msra.mxu0 0
    %425 = vmatprep.subr.bf16.mxu0 0
    %426 = vmatpush2.bf16.msra.mxu0 0
    %427 = vmatprep.subr.bf16.mxu0 0
    %428 = vmatpush2.bf16.msra.mxu0 0
    %429 = vmatprep.subr.bf16.mxu0 0
    %430 = vmatpush2.bf16.msra.mxu0 0
    %431 = vmatprep.subr.bf16.mxu0 0
    %432 = vmatpush2.bf16.msra.mxu0 0
    %433 = vmatprep.subr.bf16.mxu0 0
    %434 = vmatpush2.bf16.msra.mxu0 0
    %435 = vmatprep.mubr.bf16.mxu0 0
    %436 = vmatmul.mubr.bf16.gmra.mxu0 %v401
    %v437 = vpop.f32.mrf.mxu0
    %v438 = vadd.f32 %v386, %v437
    %v439 = vpop.f32.mrf.mxu0
    %v440 = vpop.f32.mrf.mxu0
    %v441 = vpop.f32.mrf.mxu0
    %442 = vdwg.mxu0
    %v443 = vmax.f32 %v438, 0.0
    %v444 = vpack.c.bf16 %v443, %v443
    %v445 = vld [vmem:[%s11] sm:$0xf]
    %v446 = vld [vmem:[%s11 + $0x4] sm:$0xf]
    %v447 = vld [vmem:[%s12] sm:$0x1]
    %v449 = vlaneseq
    %v450 = vshrl.u32 %v449, 7
    %v451 = vsub.s32 0, %v450
    %v452 = vrot.slane %v447, %v451
    %v456 = vunpack.c.l.b16 %v445
    %v457 = vunpack.c.l.b16 %v446
    %v458 = vpack.c.b16 %v457, %v456
    %vm460 = vcmask 130048
    %v462 = vsel %vm460, %v444, 0
    %464 = vmatprep.subr.bf16.mxu0 0
    %465 = vmatpush1.bf16.msra.mxu0 0
    %466 = vmatprep.subr.bf16.mxu0 0
    %467 = vmatpush1.bf16.msra.mxu0 0
    %468 = vmatprep.subr.bf16.mxu0 0
    %469 = vmatpush1.bf16.msra.mxu0 0
    %470 = vmatprep.subr.bf16.mxu0 0
    %471 = vmatpush1.bf16.msra.mxu0 0
    %472 = vmatprep.subr.bf16.mxu0 0
    %473 = vmatpush1.bf16.msra.mxu0 0
    %474 = vmatprep.subr.bf16.mxu0 0
    %475 = vmatpush1.bf16.msra.mxu0 0
    %476 = vmatprep.subr.bf16.mxu0 0
    %477 = vmatpush1.bf16.msra.mxu0 0
    %478 = vmatprep.subr.bf16.mxu0 0
    %479 = vmatpush1.bf16.msra.mxu0 %v458
    %480 = vmatprep.subr.bf16.mxu0 0
    %481 = vmatpush2.bf16.msra.mxu0 0
    %482 = vmatprep.subr.bf16.mxu0 0
    %483 = vmatpush2.bf16.msra.mxu0 0
    %484 = vmatprep.subr.bf16.mxu0 0
    %485 = vmatpush2.bf16.msra.mxu0 0
    %486 = vmatprep.subr.bf16.mxu0 0
    %487 = vmatpush2.bf16.msra.mxu0 0
    %488 = vmatprep.subr.bf16.mxu0 0
    %489 = vmatpush2.bf16.msra.mxu0 0
    %490 = vmatprep.subr.bf16.mxu0 0
    %491 = vmatpush2.bf16.msra.mxu0 0
    %492 = vmatprep.subr.bf16.mxu0 0
    %493 = vmatpush2.bf16.msra.mxu0 0
    %494 = vmatprep.subr.bf16.mxu0 0
    %495 = vmatpush2.bf16.msra.mxu0 0
    %496 = vmatprep.mubr.bf16.mxu0 0
    %497 = vmatmul.mubr.bf16.gmra.mxu0 %v462
    %v498 = vpop.f32.mrf.mxu0
    %v499 = vadd.f32 %v452, %v498
    %v500 = vpop.f32.mrf.mxu0
    %v501 = vpop.f32.mrf.mxu0
    %v502 = vpop.f32.mrf.mxu0
    %503 = vdwg.mxu0
    %vm504 = vcmask 31744
    %505 = vst.msk [vmem:[%s13] sm:$0xff] %vm504, %v499
    // Predicated region
    $region62: #{tpu_custom_call.1} parent=1 // pred_check
      _
    $region63: #{tpu_custom_call.1} parent=1 // pred_check_branch
      %507 = sbr.rel (0) target = $region65
    $region64: #{tpu_custom_call.1} parent=1 // pred_region
      _
    $region65: #{tpu_custom_call.1} parent=1 // pred_fallthru
      _
    // Predicated region
    $region66: #{tpu_custom_call.1} parent=1 // pred_check
      _
    $region67: #{tpu_custom_call.1} parent=1 // pred_check_branch
      %509 = sbr.rel (0) target = $region69
    $region68: #{tpu_custom_call.1} parent=1 // pred_region
      _
    $region69: #{tpu_custom_call.1} parent=1 // pred_fallthru
      _
    %510 = vsyncpa [#allocation3], 1
    %511 = vsyncpa [#allocation5], 1

</llo_original>
